<compile_context>
chip_gen: v6e
topology: v6e:2x2x1
jax: 0.10.0
libtpu: 0.0.40
codegen_flags: <defaults>
</compile_context>

<pallas_src>
import functools

import jax
import jax.numpy as jnp
from jax import lax
from jax.experimental import pallas as pl
from jax.experimental.pallas import tpu as pltpu


def _elu(z):
    # PyTorch nn.ELU(alpha=1.0): z if z > 0 else exp(z) - 1
    return jnp.where(z > 0, z, jnp.exp(z) - 1.0)


# ----------------------------------------------------------------------------
# Kernel bodies
# ----------------------------------------------------------------------------
def _mlp(x, t, w1_ref, b1_ref, w2_ref, b2_ref, w3_ref, b3_ref, w4_ref, b4_ref,
         *, x_dim, elem_dt):
    """Shared MLP body. x: (TB, x_dim) f32; t: (TB, 1) f32 or a scalar.
    Returns the lane-padded f32 last-layer output (TB, out_pad)."""
    mm_dt = w2_ref.dtype

    # Layer 1: rank-1 VPU broadcast-FMAs (no K=3 MXU pass, no HBM concat).
    z1 = b1_ref[...] + t * w1_ref[x_dim:x_dim + 1, :]
    for j in range(x_dim):                        # static unroll, x_dim is tiny
        z1 = z1 + x[:, j:j + 1] * w1_ref[j:j + 1, :]
    a1 = _elu(z1.astype(elem_dt))

    # Layers 2-3: MXU matmuls with f32 accumulation; bias+ELU in elem_dt.
    z2 = jnp.dot(a1.astype(mm_dt), w2_ref[...],
                 preferred_element_type=jnp.float32)
    a2 = _elu(z2.astype(elem_dt) + b2_ref[...].astype(elem_dt))
    z3 = jnp.dot(a2.astype(mm_dt), w3_ref[...],
                 preferred_element_type=jnp.float32)
    a3 = _elu(z3.astype(elem_dt) + b3_ref[...].astype(elem_dt))

    # Layer 4: lane-padded weights keep the MXU shape regular; stays f32.
    return jnp.dot(a3.astype(mm_dt), w4_ref[...],
                   preferred_element_type=jnp.float32) + b4_ref[...]


def flow_mlp_kernel(x_ref, t_ref, w1_ref, b1_ref, w2_ref, b2_ref,
                    w3_ref, b3_ref, w4_ref, b4_ref, out_ref, *,
                    x_dim, bf16_elem):
    elem_dt = jnp.bfloat16 if bf16_elem else jnp.float32
    z4 = _mlp(x_ref[...], t_ref[...], w1_ref, b1_ref, w2_ref, b2_ref,
              w3_ref, b3_ref, w4_ref, b4_ref, x_dim=x_dim, elem_dt=elem_dt)
    # Store only the real output columns; padded z4 never touches HBM.
    out_ref[...] = z4[:, :x_dim].astype(out_ref.dtype)


def flow_sample_kernel(x0_ref, w1_ref, b1_ref, w2_ref, b2_ref,
                       w3_ref, b3_ref, w4_ref, b4_ref, out_ref, *,
                       x_dim, num_steps, dt, bf16_elem):
    """Fused Euler integration: x_{i+1} = x_i + dt * v(i*dt, x_i)."""
    elem_dt = jnp.bfloat16 if bf16_elem else jnp.float32

    def step(i, x):
        t = i.astype(jnp.float32) * dt            # ts[i] = i / num_steps
        z4 = _mlp(x, t, w1_ref, b1_ref, w2_ref, b2_ref, w3_ref, b3_ref,
                  w4_ref, b4_ref, x_dim=x_dim, elem_dt=elem_dt)
        return x + dt * z4[:, :x_dim]

    out_ref[...] = lax.fori_loop(0, num_steps, step, x0_ref[...])


# ----------------------------------------------------------------------------
# Device / tiling policy
# ----------------------------------------------------------------------------
def _device_kind():
    try:
        return jax.devices()[0].device_kind.lower()
    except Exception:
        return ""


def _supports_bf16_elementwise():
    # v6e / v7x have bf16 VPU+EUP; v5e (and older) do not -> keep f32 there.
    k = _device_kind()
    return ("v6" in k) or ("v7" in k)


def _num_tensorcores():
    # v7x has 2 TensorCores per chip; earlier generations have 1.
    return 2 if "v7" in _device_kind() else 1


def _choose_tile_b(B, num_cores=1):
    """Rows per grid step. The grid is a sequential loop on 1-TC chips, so
    prefer a single big tile; cap at 2048 rows (a few MiB of f32 activations,
    comfortably inside the scoped-VMEM limit on every generation). On 2-TC
    chips keep the tile count a multiple of the core count so the 'parallel'
    axis shards across TensorCores."""
    cap = 2048
    if num_cores <= 1 and B <= cap:
        return B                                   # grid = 1, block == array
    n_tiles = max(num_cores, -(-B // cap))
    if num_cores > 1:
        n_tiles = -(-n_tiles // num_cores) * num_cores
    per = -(-B // n_tiles)
    tile = -(-per // 8) * 8                        # sublane multiple
    return max(8, min(tile, cap))


# ----------------------------------------------------------------------------
# Parameter preparation (one-time; hoisted out of the per-call path)
# ----------------------------------------------------------------------------
def prepare_params(params, *, use_bf16=True):
    """Lane-pad the output layer to a multiple of 128 columns (regular MXU
    operand; kept in-register only) and optionally cast the MXU operands of
    layers 2-4 to bf16. f32 accumulation always happens in the kernel."""
    w1, b1, w2, b2, w3, b3, w4, b4 = params
    h, x_dim = w4.shape
    out_pad = -(-x_dim // 128) * 128
    w4p = jnp.zeros((h, out_pad), jnp.float32).at[:, :x_dim].set(w4)
    b4p = jnp.zeros((1, out_pad), jnp.float32).at[:, :x_dim].set(b4)
    mm_dt = jnp.bfloat16 if use_bf16 else jnp.float32
    return (w1, b1, w2.astype(mm_dt), b2, w3.astype(mm_dt), b3,
            w4p.astype(mm_dt), b4p)


# ----------------------------------------------------------------------------
# Wrappers
# ----------------------------------------------------------------------------
def _compiler_params():
    return pltpu.CompilerParams(
        dimension_semantics=("parallel",),
        vmem_limit_bytes=32 * 1024 * 1024,
    )


def flow_forward(t, x_t, prep, *, tile_b=None, bf16_elementwise=None):
    """t: (B, 1), x_t: (B, x_dim) -> velocity (B, x_dim). `prep` comes from
    prepare_params(); all config is derived from static shapes (jit-friendly)."""
    w1, b1, w2m, b2, w3m, b3, w4m, b4p = prep
    B, x_dim = x_t.shape

    if bf16_elementwise is None:
        bf16_elementwise = _supports_bf16_elementwise() and w2m.dtype == jnp.bfloat16
    if tile_b is None:
        tile_b = _choose_tile_b(B, _num_tensorcores())

    n_tiles = -(-B // tile_b)
    B_pad = n_tiles * tile_b
    if B_pad != B:
        x_t = jnp.pad(x_t, ((0, B_pad - B), (0, 0)))
        t = jnp.pad(t, ((0, B_pad - B), (0, 0)))

    full = lambda a: pl.BlockSpec(a.shape, lambda i: (0, 0))
    kernel = functools.partial(flow_mlp_kernel, x_dim=x_dim,
                               bf16_elem=bf16_elementwise)

    out = pl.pallas_call(
        kernel,
        out_shape=jax.ShapeDtypeStruct((B_pad, x_dim), jnp.float32),
        grid_spec=pltpu.PrefetchScalarGridSpec(
            num_scalar_prefetch=0,
            grid=(n_tiles,),
            in_specs=[
                pl.BlockSpec((tile_b, x_dim), lambda i: (i, 0)),   # x_t tile
                pl.BlockSpec((tile_b, 1), lambda i: (i, 0)),       # t tile
                full(w1), full(b1), full(w2m), full(b2),
                full(w3m), full(b3), full(w4m), full(b4p),
            ],
            out_specs=pl.BlockSpec((tile_b, x_dim), lambda i: (i, 0)),
        ),
        compiler_params=_compiler_params(),
    )(x_t, t, w1, b1, w2m, b2, w3m, b3, w4m, b4p)

    return out if B_pad == B else out[:B]


def flow_sample(x_0, prep, *, num_steps=200, tile_b=None, bf16_elementwise=None):
    """Fused Flow.sample: weights and state stay in VMEM across all Euler
    steps; only the final state is written to HBM."""
    w1, b1, w2m, b2, w3m, b3, w4m, b4p = prep
    B, x_dim = x_0.shape
    dt = 1.0 / num_steps

    if bf16_elementwise is None:
        bf16_elementwise = _supports_bf16_elementwise() and w2m.dtype == jnp.bfloat16
    if tile_b is None:
        tile_b = _choose_tile_b(B, _num_tensorcores())

    n_tiles = -(-B // tile_b)
    B_pad = n_tiles * tile_b
    if B_pad != B:
        x_0 = jnp.pad(x_0, ((0, B_pad - B), (0, 0)))

    full = lambda a: pl.BlockSpec(a.shape, lambda i: (0, 0))
    kernel = functools.partial(flow_sample_kernel, x_dim=x_dim,
                               num_steps=num_steps, dt=dt,
                               bf16_elem=bf16_elementwise)

    out = pl.pallas_call(
        kernel,
        out_shape=jax.ShapeDtypeStruct((B_pad, x_dim), jnp.float32),
        grid_spec=pltpu.PrefetchScalarGridSpec(
            num_scalar_prefetch=0,
            grid=(n_tiles,),
            in_specs=[
                pl.BlockSpec((tile_b, x_dim), lambda i: (i, 0)),   # x_0 tile
                full(w1), full(b1), full(w2m), full(b2),
                full(w3m), full(b3), full(w4m), full(b4p),
            ],
            out_specs=pl.BlockSpec((tile_b, x_dim), lambda i: (i, 0)),
        ),
        compiler_params=_compiler_params(),
    )(x_0, w1, b1, w2m, b2, w3m, b3, w4m, b4p)

    return out if B_pad == B else out[:B]

# TODO(synk): Flow.sample_path (full (num_steps+1, B, 2) trajectory) stays
# host-side orchestration over flow_forward; only the final-state sampler is
# fused in-kernel.


# ----------------------------------------------------------------------------
# Pure-JAX references / init
# ----------------------------------------------------------------------------
def init_flow_params(key, x_dim=2, h=128):
    """Deterministic synthetic init mimicking PyTorch Linear default
    (uniform(-1/sqrt(fan_in), 1/sqrt(fan_in)))."""
    dims = [(x_dim + 1, h), (h, h), (h, h), (h, x_dim)]
    params = []
    for (fan_in, fan_out) in dims:
        key, kw, kb = jax.random.split(key, 3)
        bound = 1.0 / jnp.sqrt(fan_in)
        w = jax.random.uniform(kw, (fan_in, fan_out), jnp.float32, -bound, bound)
        b = jax.random.uniform(kb, (1, fan_out), jnp.float32, -bound, bound)
        params.extend([w, b])
    return tuple(params)


def flow_forward_ref(t, x_t, params):
    """Pure-JAX reference with HIGHEST matmul precision (true f32)."""
    w1, b1, w2, b2, w3, b3, w4, b4 = params
    hp = jax.lax.Precision.HIGHEST
    a = jnp.concatenate([x_t, t], axis=-1)
    a = _elu(jnp.dot(a, w1, precision=hp) + b1)
    a = _elu(jnp.dot(a, w2, precision=hp) + b2)
    a = _elu(jnp.dot(a, w3, precision=hp) + b3)
    return jnp.dot(a, w4, precision=hp) + b4


def flow_sample_ref(x_0, params, num_steps):
    dt = 1.0 / num_steps
    x = x_0
    for i in range(num_steps):
        t = jnp.full((x.shape[0], 1), i * dt, jnp.float32)
        x = x + dt * flow_forward_ref(t, x, params)
    return x


# ----------------------------------------------------------------------------
if __name__ == "__main__":
    key = jax.random.PRNGKey(0)
    k_params, k_x, k_t, k_x0 = jax.random.split(key, 4)

    B, X_DIM, H = 64, 2, 128
    params = init_flow_params(k_params, x_dim=X_DIM, h=H)

    x_t = jax.random.normal(k_x, (B, X_DIM), jnp.float32)
    t = jax.random.uniform(k_t, (B, 1), jnp.float32)

    v_ref = flow_forward_ref(t, x_t, params)

    # One-time weight prep (hoisted), then jit the whole forward.
    prep_f32 = prepare_params(params, use_bf16=False)
    prep_fast = prepare_params(params, use_bf16=True)
    fwd = jax.jit(flow_forward)

    # Full-precision path: tight match vs the PyTorch-equivalent reference.
    v_f32 = jax.block_until_ready(fwd(t, x_t, prep_f32))
    assert v_f32.shape == (B, X_DIM)
    assert jnp.allclose(v_f32, v_ref, atol=1e-3, rtol=1e-3), "f32 mismatch vs reference"

    # Fast path: bf16 MXU operands (+ bf16 elementwise on v6e/v7x), f32 accumulation.
    v_fast = jax.block_until_ready(fwd(t, x_t, prep_fast))
    assert v_fast.shape == (B, X_DIM)
    assert jnp.allclose(v_fast, v_ref, atol=1e-1, rtol=1e-1), "bf16 mismatch vs reference"

    # Fused Euler sampler (Flow.sample) with a small step count for the check.
    NUM_STEPS = 8
    x_0 = jax.random.normal(k_x0, (B, X_DIM), jnp.float32)
    xT_ref = flow_sample_ref(x_0, params, NUM_STEPS)
    sample = jax.jit(flow_sample, static_argnames=("num_steps",))

    xT_f32 = jax.block_until_ready(sample(x_0, prep_f32, num_steps=NUM_STEPS))
    assert xT_f32.shape == (B, X_DIM)
    assert jnp.allclose(xT_f32, xT_ref, atol=2e-3, rtol=2e-3), "sampler f32 mismatch"

    xT_fast = jax.block_until_ready(sample(x_0, prep_fast, num_steps=NUM_STEPS))
    assert xT_fast.shape == (B, X_DIM)
    assert jnp.allclose(xT_fast, xT_ref, atol=2e-1, rtol=2e-1), "sampler bf16 mismatch"

    print("KERNEL_OK")
</pallas_src>

<mosaic_0001>
module attributes {stable_mosaic.version = 11 : i64} {
  func.func @flow_mlp_kernel(%arg0: i32, %arg1: memref<64x2xf32, #tpu.memory_space<vmem>>, %arg2: memref<64x1xf32, #tpu.memory_space<vmem>>, %arg3: memref<3x128xf32, #tpu.memory_space<vmem>>, %arg4: memref<1x128xf32, #tpu.memory_space<vmem>>, %arg5: memref<128x128xf32, #tpu.memory_space<vmem>>, %arg6: memref<1x128xf32, #tpu.memory_space<vmem>>, %arg7: memref<128x128xf32, #tpu.memory_space<vmem>>, %arg8: memref<1x128xf32, #tpu.memory_space<vmem>>, %arg9: memref<128x128xf32, #tpu.memory_space<vmem>>, %arg10: memref<1x128xf32, #tpu.memory_space<vmem>>, %arg11: memref<64x2xf32, #tpu.memory_space<vmem>>) attributes {dimension_semantics = [#tpu.dimension_semantics<parallel>], iteration_bounds = array<i64: 1>, scalar_prefetch = 0 : i64, scratch_operands = 0 : i64, tpu.core_type = #tpu.core_type<tc>, window_params = [{transform_indices = @transform_0, window_bounds = array<i64: 64, 2>}, {transform_indices = @transform_1, window_bounds = array<i64: 64, 1>}, {pipeline_mode = #tpu.pipeline_mode<synchronous>, transform_indices = @transform_2, window_bounds = array<i64: 3, 128>}, {pipeline_mode = #tpu.pipeline_mode<synchronous>, transform_indices = @transform_3, window_bounds = array<i64: 1, 128>}, {pipeline_mode = #tpu.pipeline_mode<synchronous>, transform_indices = @transform_4, window_bounds = array<i64: 128, 128>}, {pipeline_mode = #tpu.pipeline_mode<synchronous>, transform_indices = @transform_5, window_bounds = array<i64: 1, 128>}, {pipeline_mode = #tpu.pipeline_mode<synchronous>, transform_indices = @transform_6, window_bounds = array<i64: 128, 128>}, {pipeline_mode = #tpu.pipeline_mode<synchronous>, transform_indices = @transform_7, window_bounds = array<i64: 1, 128>}, {pipeline_mode = #tpu.pipeline_mode<synchronous>, transform_indices = @transform_8, window_bounds = array<i64: 128, 128>}, {pipeline_mode = #tpu.pipeline_mode<synchronous>, transform_indices = @transform_9, window_bounds = array<i64: 1, 128>}, {transform_indices = @transform_10, window_bounds = array<i64: 64, 2>}]} {
    %c0 = arith.constant 0 : index
    %c0_0 = arith.constant 0 : index
    %0 = vector.load %arg1[%c0, %c0_0] : memref<64x2xf32, #tpu.memory_space<vmem>>, vector<64x2xf32>
    %c0_1 = arith.constant 0 : index
    %c0_2 = arith.constant 0 : index
    %1 = vector.load %arg2[%c0_1, %c0_2] : memref<64x1xf32, #tpu.memory_space<vmem>>, vector<64x1xf32>
    %c0_3 = arith.constant 0 : index
    %c0_4 = arith.constant 0 : index
    %2 = vector.load %arg4[%c0_3, %c0_4] : memref<1x128xf32, #tpu.memory_space<vmem>>, vector<1x128xf32>
    %c2 = arith.constant 2 : index
    %c0_5 = arith.constant 0 : index
    %3 = vector.load %arg3[%c2, %c0_5] : memref<3x128xf32, #tpu.memory_space<vmem>>, vector<1x128xf32>
    %4 = vector.broadcast %1 : vector<64x1xf32> to vector<64x128xf32>
    %5 = vector.broadcast %3 : vector<1x128xf32> to vector<64x128xf32>
    %6 = arith.mulf %4, %5 : vector<64x128xf32>
    %7 = vector.broadcast %2 : vector<1x128xf32> to vector<64x128xf32>
    %8 = arith.addf %7, %6 : vector<64x128xf32>
    %9 = vector.extract_strided_slice %0 {offsets = [0, 0], sizes = [64, 1], strides = [1, 1]} : vector<64x2xf32> to vector<64x1xf32>
    %c0_6 = arith.constant 0 : index
    %c0_7 = arith.constant 0 : index
    %10 = vector.load %arg3[%c0_6, %c0_7] : memref<3x128xf32, #tpu.memory_space<vmem>>, vector<1x128xf32>
    %11 = vector.broadcast %9 : vector<64x1xf32> to vector<64x128xf32>
    %12 = vector.broadcast %10 : vector<1x128xf32> to vector<64x128xf32>
    %13 = arith.mulf %11, %12 : vector<64x128xf32>
    %14 = arith.addf %8, %13 : vector<64x128xf32>
    %15 = vector.extract_strided_slice %0 {offsets = [0, 1], sizes = [64, 1], strides = [1, 1]} : vector<64x2xf32> to vector<64x1xf32>
    %c1 = arith.constant 1 : index
    %c0_8 = arith.constant 0 : index
    %16 = vector.load %arg3[%c1, %c0_8] : memref<3x128xf32, #tpu.memory_space<vmem>>, vector<1x128xf32>
    %17 = vector.broadcast %15 : vector<64x1xf32> to vector<64x128xf32>
    %18 = vector.broadcast %16 : vector<1x128xf32> to vector<64x128xf32>
    %19 = arith.mulf %17, %18 : vector<64x128xf32>
    %20 = arith.addf %14, %19 : vector<64x128xf32>
    %cst = arith.constant 0.000000e+00 : f32
    %21 = vector.broadcast %cst : f32 to vector<64x128xf32>
    %22 = arith.cmpf ogt, %20, %21 : vector<64x128xf32>
    %23 = math.exp %20 : vector<64x128xf32>
    %cst_9 = arith.constant 1.000000e+00 : f32
    %24 = vector.broadcast %cst_9 : f32 to vector<64x128xf32>
    %25 = arith.subf %23, %24 : vector<64x128xf32>
    %26 = arith.select %22, %20, %25 : vector<64x128xi1>, vector<64x128xf32>
    %c0_10 = arith.constant 0 : index
    %c0_11 = arith.constant 0 : index
    %27 = vector.load %arg5[%c0_10, %c0_11] : memref<128x128xf32, #tpu.memory_space<vmem>>, vector<128x128xf32>
    %cst_12 = arith.constant dense<0.000000e+00> : vector<64x128xf32>
    %28 = tpu.matmul %26, %27, %cst_12 {dimension_numbers = #tpu.dot_dimension_numbers<[1], [0], [0], [1], [0, 0, 1, 1], [], []>} : vector<64x128xf32>, vector<128x128xf32>, vector<64x128xf32> -> vector<64x128xf32>
    %c0_13 = arith.constant 0 : index
    %c0_14 = arith.constant 0 : index
    %29 = vector.load %arg6[%c0_13, %c0_14] : memref<1x128xf32, #tpu.memory_space<vmem>>, vector<1x128xf32>
    %30 = vector.broadcast %29 : vector<1x128xf32> to vector<64x128xf32>
    %31 = arith.addf %28, %30 : vector<64x128xf32>
    %cst_15 = arith.constant 0.000000e+00 : f32
    %32 = vector.broadcast %cst_15 : f32 to vector<64x128xf32>
    %33 = arith.cmpf ogt, %31, %32 : vector<64x128xf32>
    %34 = math.exp %31 : vector<64x128xf32>
    %cst_16 = arith.constant 1.000000e+00 : f32
    %35 = vector.broadcast %cst_16 : f32 to vector<64x128xf32>
    %36 = arith.subf %34, %35 : vector<64x128xf32>
    %37 = arith.select %33, %31, %36 : vector<64x128xi1>, vector<64x128xf32>
    %c0_17 = arith.constant 0 : index
    %c0_18 = arith.constant 0 : index
    %38 = vector.load %arg7[%c0_17, %c0_18] : memref<128x128xf32, #tpu.memory_space<vmem>>, vector<128x128xf32>
    %cst_19 = arith.constant dense<0.000000e+00> : vector<64x128xf32>
    %39 = tpu.matmul %37, %38, %cst_19 {dimension_numbers = #tpu.dot_dimension_numbers<[1], [0], [0], [1], [0, 0, 1, 1], [], []>} : vector<64x128xf32>, vector<128x128xf32>, vector<64x128xf32> -> vector<64x128xf32>
    %c0_20 = arith.constant 0 : index
    %c0_21 = arith.constant 0 : index
    %40 = vector.load %arg8[%c0_20, %c0_21] : memref<1x128xf32, #tpu.memory_space<vmem>>, vector<1x128xf32>
    %41 = vector.broadcast %40 : vector<1x128xf32> to vector<64x128xf32>
    %42 = arith.addf %39, %41 : vector<64x128xf32>
    %cst_22 = arith.constant 0.000000e+00 : f32
    %43 = vector.broadcast %cst_22 : f32 to vector<64x128xf32>
    %44 = arith.cmpf ogt, %42, %43 : vector<64x128xf32>
    %45 = math.exp %42 : vector<64x128xf32>
    %cst_23 = arith.constant 1.000000e+00 : f32
    %46 = vector.broadcast %cst_23 : f32 to vector<64x128xf32>
    %47 = arith.subf %45, %46 : vector<64x128xf32>
    %48 = arith.select %44, %42, %47 : vector<64x128xi1>, vector<64x128xf32>
    %c0_24 = arith.constant 0 : index
    %c0_25 = arith.constant 0 : index
    %49 = vector.load %arg9[%c0_24, %c0_25] : memref<128x128xf32, #tpu.memory_space<vmem>>, vector<128x128xf32>
    %cst_26 = arith.constant dense<0.000000e+00> : vector<64x128xf32>
    %50 = tpu.matmul %48, %49, %cst_26 {dimension_numbers = #tpu.dot_dimension_numbers<[1], [0], [0], [1], [0, 0, 1, 1], [], []>} : vector<64x128xf32>, vector<128x128xf32>, vector<64x128xf32> -> vector<64x128xf32>
    %c0_27 = arith.constant 0 : index
    %c0_28 = arith.constant 0 : index
    %51 = vector.load %arg10[%c0_27, %c0_28] : memref<1x128xf32, #tpu.memory_space<vmem>>, vector<1x128xf32>
    %52 = vector.broadcast %51 : vector<1x128xf32> to vector<64x128xf32>
    %53 = arith.addf %50, %52 : vector<64x128xf32>
    %54 = vector.extract_strided_slice %53 {offsets = [0, 0], sizes = [64, 2], strides = [1, 1]} : vector<64x128xf32> to vector<64x2xf32>
    %c0_29 = arith.constant 0 : index
    %c0_30 = arith.constant 0 : index
    %55 = vector.load %arg11[%c0_29, %c0_30] : memref<64x2xf32, #tpu.memory_space<vmem>>, vector<64x2xf32>
    tpu.vector_store %arg11[%c0_29, %c0_30], %54 {strides = array<i32>} : memref<64x2xf32, #tpu.memory_space<vmem>>, vector<64x2xf32>,
    return
  }
  func.func @transform_0(%arg0: i32) -> (i32, i32) {
    %c0_i32 = arith.constant 0 : i32
    %c0_i32_0 = arith.constant 0 : i32
    return %arg0, %c0_i32 : i32, i32
  }
  func.func @transform_1(%arg0: i32) -> (i32, i32) {
    %c0_i32 = arith.constant 0 : i32
    %c0_i32_0 = arith.constant 0 : i32
    return %arg0, %c0_i32 : i32, i32
  }
  func.func @transform_2(%arg0: i32) -> (i32, i32) {
    %c0_i32 = arith.constant 0 : i32
    %c0_i32_0 = arith.constant 0 : i32
    %c0_i32_1 = arith.constant 0 : i32
    return %c0_i32, %c0_i32_0 : i32, i32
  }
  func.func @transform_3(%arg0: i32) -> (i32, i32) {
    %c0_i32 = arith.constant 0 : i32
    %c0_i32_0 = arith.constant 0 : i32
    %c0_i32_1 = arith.constant 0 : i32
    return %c0_i32, %c0_i32_0 : i32, i32
  }
  func.func @transform_4(%arg0: i32) -> (i32, i32) {
    %c0_i32 = arith.constant 0 : i32
    %c0_i32_0 = arith.constant 0 : i32
    %c0_i32_1 = arith.constant 0 : i32
    return %c0_i32, %c0_i32_0 : i32, i32
  }
  func.func @transform_5(%arg0: i32) -> (i32, i32) {
    %c0_i32 = arith.constant 0 : i32
    %c0_i32_0 = arith.constant 0 : i32
    %c0_i32_1 = arith.constant 0 : i32
    return %c0_i32, %c0_i32_0 : i32, i32
  }
  func.func @transform_6(%arg0: i32) -> (i32, i32) {
    %c0_i32 = arith.constant 0 : i32
    %c0_i32_0 = arith.constant 0 : i32
    %c0_i32_1 = arith.constant 0 : i32
    return %c0_i32, %c0_i32_0 : i32, i32
  }
  func.func @transform_7(%arg0: i32) -> (i32, i32) {
    %c0_i32 = arith.constant 0 : i32
    %c0_i32_0 = arith.constant 0 : i32
    %c0_i32_1 = arith.constant 0 : i32
    return %c0_i32, %c0_i32_0 : i32, i32
  }
  func.func @transform_8(%arg0: i32) -> (i32, i32) {
    %c0_i32 = arith.constant 0 : i32
    %c0_i32_0 = arith.constant 0 : i32
    %c0_i32_1 = arith.constant 0 : i32
    return %c0_i32, %c0_i32_0 : i32, i32
  }
  func.func @transform_9(%arg0: i32) -> (i32, i32) {
    %c0_i32 = arith.constant 0 : i32
    %c0_i32_0 = arith.constant 0 : i32
    %c0_i32_1 = arith.constant 0 : i32
    return %c0_i32, %c0_i32_0 : i32, i32
  }
  func.func @transform_10(%arg0: i32) -> (i32, i32) {
    %c0_i32 = arith.constant 0 : i32
    %c0_i32_0 = arith.constant 0 : i32
    return %arg0, %c0_i32 : i32, i32
  }
}

</mosaic_0001>

<llo_original>
// kernel: flow_forward.1
$region0: #{flow_forward.1}
  #allocation0 [shape = 'u32[]', space=smem, size = 0x4, offset = 0x4, fixed_abs, tag = 'smem constant byte address 0x4 - core index']
  #allocation1 [shape = 'u32[144,128]{1,0:T(1,128)}', space=vmem, size = 0x12000, scoped, tag = 'internal scratch']
  %s0 = inlined_call_operand.vmem [shape: f32[64,2], index: 0, kind: input, shape index: {}]
  %s1 = inlined_call_operand.vmem [shape: f32[64,1], index: 1, kind: input, shape index: {}]
  %s2 = inlined_call_operand.vmem [shape: f32[3,128], index: 2, kind: input, shape index: {}]
  %s3 = inlined_call_operand.vmem [shape: f32[1,128], index: 3, kind: input, shape index: {}]
  %s4 = inlined_call_operand.vmem [shape: f32[128,128], index: 4, kind: input, shape index: {}]
  %s5 = inlined_call_operand.vmem [shape: f32[1,128], index: 5, kind: input, shape index: {}]
  %s6 = inlined_call_operand.hbm [shape: f32[128,128], index: 6, kind: input, shape index: {}]
  %s7 = inlined_call_operand.vmem [shape: f32[1,128], index: 7, kind: input, shape index: {}]
  %s8 = inlined_call_operand.hbm [shape: f32[128,128], index: 8, kind: input, shape index: {}]
  %s9 = inlined_call_operand.vmem [shape: f32[1,128], index: 9, kind: input, shape index: {}]
  %s10 = inlined_call_operand.vmem [shape: f32[64,2], index: 10, kind: output, shape index: {}]
  %s11 = sld [smem:[#allocation0]]
  $region58: #{flow_forward.1} parent=0
    _
  %s13 = ssub.s32 1, %s11
  %s14 = scalar_select 0, %s13, %s11
  $region1: #{flow_forward.1} parent=0
    #allocation2 [shape = 'u8[65536]{0}', space=vmem, size = 0x10000, scoped, tag = 'input window, operand 6, single buffered']
    #allocation3 [shape = 's32[1]{0}', space=sflag, size = 0x4, scoped, tag = 'scoped memory for flow_forward.1']
    #allocation4 [shape = 'u8[65536]{0}', space=vmem, size = 0x10000, scoped, tag = 'input window, operand 8, single buffered']
    #allocation5 [shape = 's32[1]{0}', space=sflag, size = 0x4, scoped, tag = 'scoped memory for flow_forward.1']
    %15 = vsyncpa [#allocation3], 0
    %16 = vsyncpa [#allocation5], 0
    // Predicated region
    $region2: #{flow_forward.1} parent=1 // pred_check
      _
    $region3: #{flow_forward.1} parent=1 // pred_check_branch
      %18 = sbr.rel (0) target = $region5
    $region4: #{flow_forward.1} parent=1 // pred_region
      _
    $region5: #{flow_forward.1} parent=1 // pred_fallthru
      _
    // Predicated region
    $region6: #{flow_forward.1} parent=1 // pred_check
      _
    $region7: #{flow_forward.1} parent=1 // pred_check_branch
      %20 = sbr.rel (0) target = $region9
    $region8: #{flow_forward.1} parent=1 // pred_region
      _
    $region9: #{flow_forward.1} parent=1 // pred_fallthru
      _
    // Predicated region
    $region10: #{flow_forward.1} parent=1 // pred_check
      _
    $region11: #{flow_forward.1} parent=1 // pred_check_branch
      %22 = sbr.rel (0) target = $region13
    $region12: #{flow_forward.1} parent=1 // pred_region
      _
    $region13: #{flow_forward.1} parent=1 // pred_fallthru
      _
    // Predicated region
    $region14: #{flow_forward.1} parent=1 // pred_check
      _
    $region15: #{flow_forward.1} parent=1 // pred_check_branch
      %24 = sbr.rel (0) target = $region17
    $region16: #{flow_forward.1} parent=1 // pred_region
      _
    $region17: #{flow_forward.1} parent=1 // pred_fallthru
      _
    // Predicated region
    $region18: #{flow_forward.1} parent=1 // pred_check
      _
    $region19: #{flow_forward.1} parent=1 // pred_check_branch
      %26 = sbr.rel (0) target = $region21
    $region20: #{flow_forward.1} parent=1 // pred_region
      _
    $region21: #{flow_forward.1} parent=1 // pred_fallthru
      _
    // Predicated region
    $region22: #{flow_forward.1} parent=1 // pred_check
      _
    $region23: #{flow_forward.1} parent=1 // pred_check_branch
      %28 = sbr.rel (0) target = $region25
    $region24: #{flow_forward.1} parent=1 // pred_region
      _
    $region25: #{flow_forward.1} parent=1 // pred_fallthru
      _
    // Predicated region
    $region26: #{flow_forward.1} parent=1 // pred_check
      _
    $region27: #{flow_forward.1} parent=1 // pred_check_branch
      %30 = sbr.rel (0) target = $region29
    $region28: #{flow_forward.1} parent=1 // pred_region
      %s32 = ssub.s32 2048, 2048
      %33 = vsyncadd [#allocation3], %s32
      %s34 = sshll.u32 [#allocation2], 4
      %s35 = int_to_ptr.vmem [resolvable:$true] %s34
      %40 = dma.hbm_to_vmem [thread:$0]  %s6, 2048, %s35, [#allocation3], 128, 128, 8
    $region29: #{flow_forward.1} parent=1 // pred_fallthru
      _
    // Predicated region
    $region30: #{flow_forward.1} parent=1 // pred_check
      _
    $region31: #{flow_forward.1} parent=1 // pred_check_branch
      %42 = sbr.rel (0) target = $region33
    $region32: #{flow_forward.1} parent=1 // pred_region
      _
    $region33: #{flow_forward.1} parent=1 // pred_fallthru
      _
    // Predicated region
    $region34: #{flow_forward.1} parent=1 // pred_check
      _
    $region35: #{flow_forward.1} parent=1 // pred_check_branch
      %44 = sbr.rel (0) target = $region37
    $region36: #{flow_forward.1} parent=1 // pred_region
      %s46 = ssub.s32 2048, 2048
      %47 = vsyncadd [#allocation5], %s46
      %s48 = sshll.u32 [#allocation4], 4
      %s49 = int_to_ptr.vmem [resolvable:$true] %s48
      %54 = dma.hbm_to_vmem [thread:$0]  %s8, 2048, %s49, [#allocation5], 128, 128, 8
    $region37: #{flow_forward.1} parent=1 // pred_fallthru
      _
    // Predicated region
    $region38: #{flow_forward.1} parent=1 // pred_check
      _
    $region39: #{flow_forward.1} parent=1 // pred_check_branch
      %56 = sbr.rel (0) target = $region41
    $region40: #{flow_forward.1} parent=1 // pred_region
      _
    $region41: #{flow_forward.1} parent=1 // pred_fallthru
      _
    // Predicated region
    $region42: #{flow_forward.1} parent=1 // pred_check
      _
    $region43: #{flow_forward.1} parent=1 // pred_check_branch
      %58 = sbr.rel (0) target = $region45
    $region44: #{flow_forward.1} parent=1 // pred_region
      %59 = dma.done [#allocation3], 2048
    $region45: #{flow_forward.1} parent=1 // pred_fallthru
      _
    // Predicated region
    $region46: #{flow_forward.1} parent=1 // pred_check
      _
    $region47: #{flow_forward.1} parent=1 // pred_check_branch
      %61 = sbr.rel (0) target = $region49
    $region48: #{flow_forward.1} parent=1 // pred_region
      %62 = dma.done [#allocation5], 2048
    $region49: #{flow_forward.1} parent=1 // pred_fallthru
      _
    %v63 = vld [vmem:[%s0] sm:$0xff]
    %v64 = vld [vmem:[%s0 + $0x8] sm:$0xff]
    %v65 = vld [vmem:[%s0 + $0x10] sm:$0xff]
    %v66 = vld [vmem:[%s0 + $0x18] sm:$0xff]
    %v67 = vld [vmem:[%s0 + $0x20] sm:$0xff]
    %v68 = vld [vmem:[%s0 + $0x28] sm:$0xff]
    %v69 = vld [vmem:[%s0 + $0x30] sm:$0xff]
    %v70 = vld [vmem:[%s0 + $0x38] sm:$0xff]
    %v71 = vld [vmem:[%s1] sm:$0xff]
    %v72 = vld [vmem:[%s1 + $0x8] sm:$0xff]
    %v73 = vld [vmem:[%s1 + $0x10] sm:$0xff]
    %v74 = vld [vmem:[%s1 + $0x18] sm:$0xff]
    %v75 = vld [vmem:[%s1 + $0x20] sm:$0xff]
    %v76 = vld [vmem:[%s1 + $0x28] sm:$0xff]
    %v77 = vld [vmem:[%s1 + $0x30] sm:$0xff]
    %v78 = vld [vmem:[%s1 + $0x38] sm:$0xff]
    %v79 = vld [vmem:[%s3] sm:$0x1]
    %v80 = vld [vmem:[%s2 + $0x2] sm:$0x1]
    %82 = vset.pattern.permute.xlu0 0
    %83 = vperm.xlu0 %82, %v71
    %v84 = vpop.permute.xlu0 %83
    %87 = vset.pattern.permute.xlu0 0
    %88 = vperm.xlu0 %87, %v72
    %v89 = vpop.permute.xlu0 %88
    %92 = vset.pattern.permute.xlu0 0
    %93 = vperm.xlu0 %92, %v73
    %v94 = vpop.permute.xlu0 %93
    %97 = vset.pattern.permute.xlu0 0
    %98 = vperm.xlu0 %97, %v74
    %v99 = vpop.permute.xlu0 %98
    %102 = vset.pattern.permute.xlu0 0
    %103 = vperm.xlu0 %102, %v75
    %v104 = vpop.permute.xlu0 %103
    %107 = vset.pattern.permute.xlu0 0
    %108 = vperm.xlu0 %107, %v76
    %v109 = vpop.permute.xlu0 %108
    %112 = vset.pattern.permute.xlu0 0
    %113 = vperm.xlu0 %112, %v77
    %v114 = vpop.permute.xlu0 %113
    %117 = vset.pattern.permute.xlu0 0
    %118 = vperm.xlu0 %117, %v78
    %v119 = vpop.permute.xlu0 %118
    %v121 = vlaneseq
    %v122 = vshrl.u32 %v121, 7
    %v123 = vsub.s32 0, %v122
    %v124 = vrot.slane %v80, %v123
    %v125 = vmul.f32 %v84, %v124
    %v126 = vmul.f32 %v89, %v124
    %v127 = vmul.f32 %v94, %v124
    %v128 = vmul.f32 %v99, %v124
    %v129 = vmul.f32 %v104, %v124
    %v130 = vmul.f32 %v109, %v124
    %v131 = vmul.f32 %v114, %v124
    %v132 = vmul.f32 %v119, %v124
    %v134 = vlaneseq
    %v135 = vshrl.u32 %v134, 7
    %v136 = vsub.s32 0, %v135
    %v137 = vrot.slane %v79, %v136
    %v139 = vadd.f32 %v137, %v125
    %v140 = vadd.f32 %v137, %v126
    %v141 = vadd.f32 %v137, %v127
    %v142 = vadd.f32 %v137, %v128
    %v143 = vadd.f32 %v137, %v129
    %v144 = vadd.f32 %v137, %v130
    %v145 = vadd.f32 %v137, %v131
    %v146 = vadd.f32 %v137, %v132
    %v147 = vld [vmem:[%s2] sm:$0x1]
    %149 = vset.pattern.permute.xlu0 0
    %150 = vperm.xlu0 %149, %v63
    %v151 = vpop.permute.xlu0 %150
    %154 = vset.pattern.permute.xlu0 0
    %155 = vperm.xlu0 %154, %v64
    %v156 = vpop.permute.xlu0 %155
    %159 = vset.pattern.permute.xlu0 0
    %160 = vperm.xlu0 %159, %v65
    %v161 = vpop.permute.xlu0 %160
    %164 = vset.pattern.permute.xlu0 0
    %165 = vperm.xlu0 %164, %v66
    %v166 = vpop.permute.xlu0 %165
    %169 = vset.pattern.permute.xlu0 0
    %170 = vperm.xlu0 %169, %v67
    %v171 = vpop.permute.xlu0 %170
    %174 = vset.pattern.permute.xlu0 0
    %175 = vperm.xlu0 %174, %v68
    %v176 = vpop.permute.xlu0 %175
    %179 = vset.pattern.permute.xlu0 0
    %180 = vperm.xlu0 %179, %v69
    %v181 = vpop.permute.xlu0 %180
    %184 = vset.pattern.permute.xlu0 0
    %185 = vperm.xlu0 %184, %v70
    %v186 = vpop.permute.xlu0 %185
    %v188 = vlaneseq
    %v189 = vshrl.u32 %v188, 7
    %v190 = vsub.s32 0, %v189
    %v191 = vrot.slane %v147, %v190
    %v192 = vmul.f32 %v151, %v191
    %v193 = vmul.f32 %v156, %v191
    %v194 = vmul.f32 %v161, %v191
    %v195 = vmul.f32 %v166, %v191
    %v196 = vmul.f32 %v171, %v191
    %v197 = vmul.f32 %v176, %v191
    %v198 = vmul.f32 %v181, %v191
    %v199 = vmul.f32 %v186, %v191
    %v200 = vadd.f32 %v139, %v192
    %v201 = vadd.f32 %v140, %v193
    %v202 = vadd.f32 %v141, %v194
    %v203 = vadd.f32 %v142, %v195
    %v204 = vadd.f32 %v143, %v196
    %v205 = vadd.f32 %v144, %v197
    %v206 = vadd.f32 %v145, %v198
    %v207 = vadd.f32 %v146, %v199
    %v208 = vld [vmem:[%s2 + $0x1] sm:$0x1]
    %209 = vset.pattern.permute.xlu0 1
    %210 = vperm.xlu0 %209, %v63
    %v211 = vpop.permute.xlu0 %210
    %213 = vset.pattern.permute.xlu0 1
    %214 = vperm.xlu0 %213, %v64
    %v215 = vpop.permute.xlu0 %214
    %217 = vset.pattern.permute.xlu0 1
    %218 = vperm.xlu0 %217, %v65
    %v219 = vpop.permute.xlu0 %218
    %221 = vset.pattern.permute.xlu0 1
    %222 = vperm.xlu0 %221, %v66
    %v223 = vpop.permute.xlu0 %222
    %225 = vset.pattern.permute.xlu0 1
    %226 = vperm.xlu0 %225, %v67
    %v227 = vpop.permute.xlu0 %226
    %229 = vset.pattern.permute.xlu0 1
    %230 = vperm.xlu0 %229, %v68
    %v231 = vpop.permute.xlu0 %230
    %233 = vset.pattern.permute.xlu0 1
    %234 = vperm.xlu0 %233, %v69
    %v235 = vpop.permute.xlu0 %234
    %237 = vset.pattern.permute.xlu0 1
    %238 = vperm.xlu0 %237, %v70
    %v239 = vpop.permute.xlu0 %238
    %v241 = vlaneseq
    %v242 = vshrl.u32 %v241, 7
    %v243 = vsub.s32 0, %v242
    %v244 = vrot.slane %v208, %v243
    %v245 = vmul.f32 %v211, %v244
    %v246 = vmul.f32 %v215, %v244
    %v247 = vmul.f32 %v219, %v244
    %v248 = vmul.f32 %v223, %v244
    %v249 = vmul.f32 %v227, %v244
    %v250 = vmul.f32 %v231, %v244
    %v251 = vmul.f32 %v235, %v244
    %v252 = vmul.f32 %v239, %v244
    %v253 = vadd.f32 %v200, %v245
    %v254 = vadd.f32 %v201, %v246
    %v255 = vadd.f32 %v202, %v247
    %v256 = vadd.f32 %v203, %v248
    %v257 = vadd.f32 %v204, %v249
    %v258 = vadd.f32 %v205, %v250
    %v259 = vadd.f32 %v206, %v251
    %v260 = vadd.f32 %v207, %v252
    %vm261 = vcmp.gt.f32.partialorder %v253, 0.0
    %vm262 = vcmp.gt.f32.partialorder %v254, 0.0
    %vm263 = vcmp.gt.f32.partialorder %v255, 0.0
    %vm264 = vcmp.gt.f32.partialorder %v256, 0.0
    %vm265 = vcmp.gt.f32.partialorder %v257, 0.0
    %vm266 = vcmp.gt.f32.partialorder %v258, 0.0
    %vm267 = vcmp.gt.f32.partialorder %v259, 0.0
    %vm268 = vcmp.gt.f32.partialorder %v260, 0.0
    %v269 = vmul.f32 %v253, 1.442695
    %v270 = vpow.pop %v269
    %v271 = vmul.f32 %v254, 1.442695
    %v272 = vpow.pop %v271
    %v273 = vmul.f32 %v255, 1.442695
    %v274 = vpow.pop %v273
    %v275 = vmul.f32 %v256, 1.442695
    %v276 = vpow.pop %v275
    %v277 = vmul.f32 %v257, 1.442695
    %v278 = vpow.pop %v277
    %v279 = vmul.f32 %v258, 1.442695
    %v280 = vpow.pop %v279
    %v281 = vmul.f32 %v259, 1.442695
    %v282 = vpow.pop %v281
    %v283 = vmul.f32 %v260, 1.442695
    %v284 = vpow.pop %v283
    %v285 = vsub.f32 %v270, 1.0
    %v286 = vsub.f32 %v272, 1.0
    %v287 = vsub.f32 %v274, 1.0
    %v288 = vsub.f32 %v276, 1.0
    %v289 = vsub.f32 %v278, 1.0
    %v290 = vsub.f32 %v280, 1.0
    %v291 = vsub.f32 %v282, 1.0
    %v292 = vsub.f32 %v284, 1.0
    %v293 = vsel %vm261, %v253, %v285
    %v294 = vsel %vm262, %v254, %v286
    %v295 = vsel %vm263, %v255, %v287
    %v296 = vsel %vm264, %v256, %v288
    %v297 = vsel %vm265, %v257, %v289
    %v298 = vsel %vm266, %v258, %v290
    %v299 = vsel %vm267, %v259, %v291
    %v300 = vsel %vm268, %v260, %v292
    %v301 = vld [vmem:[%s4] sm:$0xff]
    %v302 = vld [vmem:[%s4 + $0x8] sm:$0xff]
    %v303 = vld [vmem:[%s4 + $0x10] sm:$0xff]
    %v304 = vld [vmem:[%s4 + $0x18] sm:$0xff]
    %v305 = vld [vmem:[%s4 + $0x20] sm:$0xff]
    %v306 = vld [vmem:[%s4 + $0x28] sm:$0xff]
    %v307 = vld [vmem:[%s4 + $0x30] sm:$0xff]
    %v308 = vld [vmem:[%s4 + $0x38] sm:$0xff]
    %v309 = vld [vmem:[%s4 + $0x40] sm:$0xff]
    %v310 = vld [vmem:[%s4 + $0x48] sm:$0xff]
    %v311 = vld [vmem:[%s4 + $0x50] sm:$0xff]
    %v312 = vld [vmem:[%s4 + $0x58] sm:$0xff]
    %v313 = vld [vmem:[%s4 + $0x60] sm:$0xff]
    %v314 = vld [vmem:[%s4 + $0x68] sm:$0xff]
    %v315 = vld [vmem:[%s4 + $0x70] sm:$0xff]
    %v316 = vld [vmem:[%s4 + $0x78] sm:$0xff]
    %v317 = vld [vmem:[%s5] sm:$0x1]
    %v319 = vlaneseq
    %v320 = vshrl.u32 %v319, 7
    %v321 = vsub.s32 0, %v320
    %v322 = vrot.slane %v317, %v321
    %324 = vmatprep.subr.mxu0 0.0
    %325 = vmatpush1.msra.mxu0 %v316
    %326 = vmatprep.subr.mxu0 0.0
    %327 = vmatpush1.msra.mxu0 %v315
    %328 = vmatprep.subr.mxu0 0.0
    %329 = vmatpush1.msra.mxu0 %v314
    %330 = vmatprep.subr.mxu0 0.0
    %331 = vmatpush1.msra.mxu0 %v313
    %332 = vmatprep.subr.mxu0 0.0
    %333 = vmatpush1.msra.mxu0 %v312
    %334 = vmatprep.subr.mxu0 0.0
    %335 = vmatpush1.msra.mxu0 %v311
    %336 = vmatprep.subr.mxu0 0.0
    %337 = vmatpush1.msra.mxu0 %v310
    %338 = vmatprep.subr.mxu0 0.0
    %339 = vmatpush1.msra.mxu0 %v309
    %340 = vmatprep.subr.mxu0 0.0
    %341 = vmatpush1.msra.mxu0 %v308
    %342 = vmatprep.subr.mxu0 0.0
    %343 = vmatpush1.msra.mxu0 %v307
    %344 = vmatprep.subr.mxu0 0.0
    %345 = vmatpush1.msra.mxu0 %v306
    %346 = vmatprep.subr.mxu0 0.0
    %347 = vmatpush1.msra.mxu0 %v305
    %348 = vmatprep.subr.mxu0 0.0
    %349 = vmatpush1.msra.mxu0 %v304
    %350 = vmatprep.subr.mxu0 0.0
    %351 = vmatpush1.msra.mxu0 %v303
    %352 = vmatprep.subr.mxu0 0.0
    %353 = vmatpush1.msra.mxu0 %v302
    %354 = vmatprep.subr.mxu0 0.0
    %355 = vmatpush1.msra.mxu0 %v301
    %356 = vmatprep.subr.mxu0 0.0
    %357 = vmatpush2.msra.mxu0 0.0
    %358 = vmatprep.subr.mxu0 0.0
    %359 = vmatpush2.msra.mxu0 0.0
    %360 = vmatprep.subr.mxu0 0.0
    %361 = vmatpush2.msra.mxu0 0.0
    %362 = vmatprep.subr.mxu0 0.0
    %363 = vmatpush2.msra.mxu0 0.0
    %364 = vmatprep.subr.mxu0 0.0
    %365 = vmatpush2.msra.mxu0 0.0
    %366 = vmatprep.subr.mxu0 0.0
    %367 = vmatpush2.msra.mxu0 0.0
    %368 = vmatprep.subr.mxu0 0.0
    %369 = vmatpush2.msra.mxu0 0.0
    %370 = vmatprep.subr.mxu0 0.0
    %371 = vmatpush2.msra.mxu0 0.0
    %372 = vmatprep.subr.mxu0 0.0
    %373 = vmatpush2.msra.mxu0 0.0
    %374 = vmatprep.subr.mxu0 0.0
    %375 = vmatpush2.msra.mxu0 0.0
    %376 = vmatprep.subr.mxu0 0.0
    %377 = vmatpush2.msra.mxu0 0.0
    %378 = vmatprep.subr.mxu0 0.0
    %379 = vmatpush2.msra.mxu0 0.0
    %380 = vmatprep.subr.mxu0 0.0
    %381 = vmatpush2.msra.mxu0 0.0
    %382 = vmatprep.subr.mxu0 0.0
    %383 = vmatpush2.msra.mxu0 0.0
    %384 = vmatprep.subr.mxu0 0.0
    %385 = vmatpush2.msra.mxu0 0.0
    %386 = vmatprep.subr.mxu0 0.0
    %387 = vmatpush2.msra.mxu0 0.0
    %388 = vmatprep.mubr.f32.mxu0 0.0
    %389 = vmatmul.mubr.f32.gmra.mxu0 %v293
    %v390 = vpop.f32.mrf.mxu0
    %v391 = vadd.f32 %v322, %v390
    %v392 = vpop.f32.mrf.mxu0
    %393 = vmatprep.mubr.f32.mxu0 0.0
    %394 = vmatmul.mubr.f32.gmra.mxu0 %v294
    %v395 = vpop.f32.mrf.mxu0
    %v396 = vadd.f32 %v322, %v395
    %v397 = vpop.f32.mrf.mxu0
    %398 = vmatprep.mubr.f32.mxu0 0.0
    %399 = vmatmul.mubr.f32.gmra.mxu0 %v295
    %v400 = vpop.f32.mrf.mxu0
    %v401 = vadd.f32 %v322, %v400
    %v402 = vpop.f32.mrf.mxu0
    %403 = vmatprep.mubr.f32.mxu0 0.0
    %404 = vmatmul.mubr.f32.gmra.mxu0 %v296
    %v405 = vpop.f32.mrf.mxu0
    %v406 = vadd.f32 %v322, %v405
    %v407 = vpop.f32.mrf.mxu0
    %408 = vmatprep.mubr.f32.mxu0 0.0
    %409 = vmatmul.mubr.f32.gmra.mxu0 %v297
    %v410 = vpop.f32.mrf.mxu0
    %v411 = vadd.f32 %v322, %v410
    %v412 = vpop.f32.mrf.mxu0
    %413 = vmatprep.mubr.f32.mxu0 0.0
    %414 = vmatmul.mubr.f32.gmra.mxu0 %v298
    %v415 = vpop.f32.mrf.mxu0
    %v416 = vadd.f32 %v322, %v415
    %v417 = vpop.f32.mrf.mxu0
    %418 = vmatprep.mubr.f32.mxu0 0.0
    %419 = vmatmul.mubr.f32.gmra.mxu0 %v299
    %v420 = vpop.f32.mrf.mxu0
    %v421 = vadd.f32 %v322, %v420
    %v422 = vpop.f32.mrf.mxu0
    %423 = vmatprep.mubr.f32.mxu0 0.0
    %424 = vmatmul.mubr.f32.gmra.mxu0 %v300
    %v425 = vpop.f32.mrf.mxu0
    %v426 = vadd.f32 %v322, %v425
    %v427 = vpop.f32.mrf.mxu0
    %428 = vdwg.mxu0
    %vm429 = vcmp.gt.f32.partialorder %v391, 0.0
    %vm430 = vcmp.gt.f32.partialorder %v396, 0.0
    %vm431 = vcmp.gt.f32.partialorder %v401, 0.0
    %vm432 = vcmp.gt.f32.partialorder %v406, 0.0
    %vm433 = vcmp.gt.f32.partialorder %v411, 0.0
    %vm434 = vcmp.gt.f32.partialorder %v416, 0.0
    %vm435 = vcmp.gt.f32.partialorder %v421, 0.0
    %vm436 = vcmp.gt.f32.partialorder %v426, 0.0
    %v437 = vmul.f32 %v391, 1.442695
    %v438 = vpow.pop %v437
    %v439 = vmul.f32 %v396, 1.442695
    %v440 = vpow.pop %v439
    %v441 = vmul.f32 %v401, 1.442695
    %v442 = vpow.pop %v441
    %v443 = vmul.f32 %v406, 1.442695
    %v444 = vpow.pop %v443
    %v445 = vmul.f32 %v411, 1.442695
    %v446 = vpow.pop %v445
    %v447 = vmul.f32 %v416, 1.442695
    %v448 = vpow.pop %v447
    %v449 = vmul.f32 %v421, 1.442695
    %v450 = vpow.pop %v449
    %v451 = vmul.f32 %v426, 1.442695
    %v452 = vpow.pop %v451
    %v453 = vsub.f32 %v438, 1.0
    %v454 = vsub.f32 %v440, 1.0
    %v455 = vsub.f32 %v442, 1.0
    %v456 = vsub.f32 %v444, 1.0
    %v457 = vsub.f32 %v446, 1.0
    %v458 = vsub.f32 %v448, 1.0
    %v459 = vsub.f32 %v450, 1.0
    %v460 = vsub.f32 %v452, 1.0
    %v461 = vsel %vm429, %v391, %v453
    %v462 = vsel %vm430, %v396, %v454
    %v463 = vsel %vm431, %v401, %v455
    %v464 = vsel %vm432, %v406, %v456
    %v465 = vsel %vm433, %v411, %v457
    %v466 = vsel %vm434, %v416, %v458
    %v467 = vsel %vm435, %v421, %v459
    %v468 = vsel %vm436, %v426, %v460
    %v469 = vld [vmem:[#allocation2] sm:$0xff]
    %v470 = vld [vmem:[#allocation2 + $0x8] sm:$0xff]
    %v471 = vld [vmem:[#allocation2 + $0x10] sm:$0xff]
    %v472 = vld [vmem:[#allocation2 + $0x18] sm:$0xff]
    %v473 = vld [vmem:[#allocation2 + $0x20] sm:$0xff]
    %v474 = vld [vmem:[#allocation2 + $0x28] sm:$0xff]
    %v475 = vld [vmem:[#allocation2 + $0x30] sm:$0xff]
    %v476 = vld [vmem:[#allocation2 + $0x38] sm:$0xff]
    %v477 = vld [vmem:[#allocation2 + $0x40] sm:$0xff]
    %v478 = vld [vmem:[#allocation2 + $0x48] sm:$0xff]
    %v479 = vld [vmem:[#allocation2 + $0x50] sm:$0xff]
    %v480 = vld [vmem:[#allocation2 + $0x58] sm:$0xff]
    %v481 = vld [vmem:[#allocation2 + $0x60] sm:$0xff]
    %v482 = vld [vmem:[#allocation2 + $0x68] sm:$0xff]
    %v483 = vld [vmem:[#allocation2 + $0x70] sm:$0xff]
    %v484 = vld [vmem:[#allocation2 + $0x78] sm:$0xff]
    %v485 = vld [vmem:[%s7] sm:$0x1]
    %v487 = vlaneseq
    %v488 = vshrl.u32 %v487, 7
    %v489 = vsub.s32 0, %v488
    %v490 = vrot.slane %v485, %v489
    %492 = vmatprep.subr.mxu0 0.0
    %493 = vmatpush1.msra.mxu0 %v484
    %494 = vmatprep.subr.mxu0 0.0
    %495 = vmatpush1.msra.mxu0 %v483
    %496 = vmatprep.subr.mxu0 0.0
    %497 = vmatpush1.msra.mxu0 %v482
    %498 = vmatprep.subr.mxu0 0.0
    %499 = vmatpush1.msra.mxu0 %v481
    %500 = vmatprep.subr.mxu0 0.0
    %501 = vmatpush1.msra.mxu0 %v480
    %502 = vmatprep.subr.mxu0 0.0
    %503 = vmatpush1.msra.mxu0 %v479
    %504 = vmatprep.subr.mxu0 0.0
    %505 = vmatpush1.msra.mxu0 %v478
    %506 = vmatprep.subr.mxu0 0.0
    %507 = vmatpush1.msra.mxu0 %v477
    %508 = vmatprep.subr.mxu0 0.0
    %509 = vmatpush1.msra.mxu0 %v476
    %510 = vmatprep.subr.mxu0 0.0
    %511 = vmatpush1.msra.mxu0 %v475
    %512 = vmatprep.subr.mxu0 0.0
    %513 = vmatpush1.msra.mxu0 %v474
    %514 = vmatprep.subr.mxu0 0.0
    %515 = vmatpush1.msra.mxu0 %v473
    %516 = vmatprep.subr.mxu0 0.0
    %517 = vmatpush1.msra.mxu0 %v472
    %518 = vmatprep.subr.mxu0 0.0
    %519 = vmatpush1.msra.mxu0 %v471
    %520 = vmatprep.subr.mxu0 0.0
    %521 = vmatpush1.msra.mxu0 %v470
    %522 = vmatprep.subr.mxu0 0.0
    %523 = vmatpush1.msra.mxu0 %v469
    %524 = vmatprep.subr.mxu0 0.0
    %525 = vmatpush2.msra.mxu0 0.0
    %526 = vmatprep.subr.mxu0 0.0
    %527 = vmatpush2.msra.mxu0 0.0
    %528 = vmatprep.subr.mxu0 0.0
    %529 = vmatpush2.msra.mxu0 0.0
    %530 = vmatprep.subr.mxu0 0.0
    %531 = vmatpush2.msra.mxu0 0.0
    %532 = vmatprep.subr.mxu0 0.0
    %533 = vmatpush2.msra.mxu0 0.0
    %534 = vmatprep.subr.mxu0 0.0
    %535 = vmatpush2.msra.mxu0 0.0
    %536 = vmatprep.subr.mxu0 0.0
    %537 = vmatpush2.msra.mxu0 0.0
    %538 = vmatprep.subr.mxu0 0.0
    %539 = vmatpush2.msra.mxu0 0.0
    %540 = vmatprep.subr.mxu0 0.0
    %541 = vmatpush2.msra.mxu0 0.0
    %542 = vmatprep.subr.mxu0 0.0
    %543 = vmatpush2.msra.mxu0 0.0
    %544 = vmatprep.subr.mxu0 0.0
    %545 = vmatpush2.msra.mxu0 0.0
    %546 = vmatprep.subr.mxu0 0.0
    %547 = vmatpush2.msra.mxu0 0.0
    %548 = vmatprep.subr.mxu0 0.0
    %549 = vmatpush2.msra.mxu0 0.0
    %550 = vmatprep.subr.mxu0 0.0
    %551 = vmatpush2.msra.mxu0 0.0
    %552 = vmatprep.subr.mxu0 0.0
    %553 = vmatpush2.msra.mxu0 0.0
    %554 = vmatprep.subr.mxu0 0.0
    %555 = vmatpush2.msra.mxu0 0.0
    %556 = vmatprep.mubr.f32.mxu0 0.0
    %557 = vmatmul.mubr.f32.gmra.mxu0 %v461
    %v558 = vpop.f32.mrf.mxu0
    %v559 = vadd.f32 %v490, %v558
    %v560 = vpop.f32.mrf.mxu0
    %561 = vmatprep.mubr.f32.mxu0 0.0
    %562 = vmatmul.mubr.f32.gmra.mxu0 %v462
    %v563 = vpop.f32.mrf.mxu0
    %v564 = vadd.f32 %v490, %v563
    %v565 = vpop.f32.mrf.mxu0
    %566 = vmatprep.mubr.f32.mxu0 0.0
    %567 = vmatmul.mubr.f32.gmra.mxu0 %v463
    %v568 = vpop.f32.mrf.mxu0
    %v569 = vadd.f32 %v490, %v568
    %v570 = vpop.f32.mrf.mxu0
    %571 = vmatprep.mubr.f32.mxu0 0.0
    %572 = vmatmul.mubr.f32.gmra.mxu0 %v464
    %v573 = vpop.f32.mrf.mxu0
    %v574 = vadd.f32 %v490, %v573
    %v575 = vpop.f32.mrf.mxu0
    %576 = vmatprep.mubr.f32.mxu0 0.0
    %577 = vmatmul.mubr.f32.gmra.mxu0 %v465
    %v578 = vpop.f32.mrf.mxu0
    %v579 = vadd.f32 %v490, %v578
    %v580 = vpop.f32.mrf.mxu0
    %581 = vmatprep.mubr.f32.mxu0 0.0
    %582 = vmatmul.mubr.f32.gmra.mxu0 %v466
    %v583 = vpop.f32.mrf.mxu0
    %v584 = vadd.f32 %v490, %v583
    %v585 = vpop.f32.mrf.mxu0
    %586 = vmatprep.mubr.f32.mxu0 0.0
    %587 = vmatmul.mubr.f32.gmra.mxu0 %v467
    %v588 = vpop.f32.mrf.mxu0
    %v589 = vadd.f32 %v490, %v588
    %v590 = vpop.f32.mrf.mxu0
    %591 = vmatprep.mubr.f32.mxu0 0.0
    %592 = vmatmul.mubr.f32.gmra.mxu0 %v468
    %v593 = vpop.f32.mrf.mxu0
    %v594 = vadd.f32 %v490, %v593
    %v595 = vpop.f32.mrf.mxu0
    %596 = vdwg.mxu0
    %vm597 = vcmp.gt.f32.partialorder %v559, 0.0
    %vm598 = vcmp.gt.f32.partialorder %v564, 0.0
    %vm599 = vcmp.gt.f32.partialorder %v569, 0.0
    %vm600 = vcmp.gt.f32.partialorder %v574, 0.0
    %vm601 = vcmp.gt.f32.partialorder %v579, 0.0
    %vm602 = vcmp.gt.f32.partialorder %v584, 0.0
    %vm603 = vcmp.gt.f32.partialorder %v589, 0.0
    %vm604 = vcmp.gt.f32.partialorder %v594, 0.0
    %v605 = vmul.f32 %v559, 1.442695
    %v606 = vpow.pop %v605
    %v607 = vmul.f32 %v564, 1.442695
    %v608 = vpow.pop %v607
    %v609 = vmul.f32 %v569, 1.442695
    %v610 = vpow.pop %v609
    %v611 = vmul.f32 %v574, 1.442695
    %v612 = vpow.pop %v611
    %v613 = vmul.f32 %v579, 1.442695
    %v614 = vpow.pop %v613
    %v615 = vmul.f32 %v584, 1.442695
    %v616 = vpow.pop %v615
    %v617 = vmul.f32 %v589, 1.442695
    %v618 = vpow.pop %v617
    %v619 = vmul.f32 %v594, 1.442695
    %v620 = vpow.pop %v619
    %v621 = vsub.f32 %v606, 1.0
    %v622 = vsub.f32 %v608, 1.0
    %v623 = vsub.f32 %v610, 1.0
    %v624 = vsub.f32 %v612, 1.0
    %v625 = vsub.f32 %v614, 1.0
    %v626 = vsub.f32 %v616, 1.0
    %v627 = vsub.f32 %v618, 1.0
    %v628 = vsub.f32 %v620, 1.0
    %v629 = vsel %vm597, %v559, %v621
    %v630 = vsel %vm598, %v564, %v622
    %v631 = vsel %vm599, %v569, %v623
    %v632 = vsel %vm600, %v574, %v624
    %v633 = vsel %vm601, %v579, %v625
    %v634 = vsel %vm602, %v584, %v626
    %v635 = vsel %vm603, %v589, %v627
    %v636 = vsel %vm604, %v594, %v628
    %v637 = vld [vmem:[#allocation4] sm:$0xff]
    %v638 = vld [vmem:[#allocation4 + $0x8] sm:$0xff]
    %v639 = vld [vmem:[#allocation4 + $0x10] sm:$0xff]
    %v640 = vld [vmem:[#allocation4 + $0x18] sm:$0xff]
    %v641 = vld [vmem:[#allocation4 + $0x20] sm:$0xff]
    %v642 = vld [vmem:[#allocation4 + $0x28] sm:$0xff]
    %v643 = vld [vmem:[#allocation4 + $0x30] sm:$0xff]
    %v644 = vld [vmem:[#allocation4 + $0x38] sm:$0xff]
    %v645 = vld [vmem:[#allocation4 + $0x40] sm:$0xff]
    %v646 = vld [vmem:[#allocation4 + $0x48] sm:$0xff]
    %v647 = vld [vmem:[#allocation4 + $0x50] sm:$0xff]
    %v648 = vld [vmem:[#allocation4 + $0x58] sm:$0xff]
    %v649 = vld [vmem:[#allocation4 + $0x60] sm:$0xff]
    %v650 = vld [vmem:[#allocation4 + $0x68] sm:$0xff]
    %v651 = vld [vmem:[#allocation4 + $0x70] sm:$0xff]
    %v652 = vld [vmem:[#allocation4 + $0x78] sm:$0xff]
    %v653 = vld [vmem:[%s9] sm:$0x1]
    %v655 = vlaneseq
    %v656 = vshrl.u32 %v655, 7
    %v657 = vsub.s32 0, %v656
    %v658 = vrot.slane %v653, %v657
    %660 = vmatprep.subr.mxu0 0.0
    %661 = vmatpush1.msra.mxu0 %v652
    %662 = vmatprep.subr.mxu0 0.0
    %663 = vmatpush1.msra.mxu0 %v651
    %664 = vmatprep.subr.mxu0 0.0
    %665 = vmatpush1.msra.mxu0 %v650
    %666 = vmatprep.subr.mxu0 0.0
    %667 = vmatpush1.msra.mxu0 %v649
    %668 = vmatprep.subr.mxu0 0.0
    %669 = vmatpush1.msra.mxu0 %v648
    %670 = vmatprep.subr.mxu0 0.0
    %671 = vmatpush1.msra.mxu0 %v647
    %672 = vmatprep.subr.mxu0 0.0
    %673 = vmatpush1.msra.mxu0 %v646
    %674 = vmatprep.subr.mxu0 0.0
    %675 = vmatpush1.msra.mxu0 %v645
    %676 = vmatprep.subr.mxu0 0.0
    %677 = vmatpush1.msra.mxu0 %v644
    %678 = vmatprep.subr.mxu0 0.0
    %679 = vmatpush1.msra.mxu0 %v643
    %680 = vmatprep.subr.mxu0 0.0
    %681 = vmatpush1.msra.mxu0 %v642
    %682 = vmatprep.subr.mxu0 0.0
    %683 = vmatpush1.msra.mxu0 %v641
    %684 = vmatprep.subr.mxu0 0.0
    %685 = vmatpush1.msra.mxu0 %v640
    %686 = vmatprep.subr.mxu0 0.0
    %687 = vmatpush1.msra.mxu0 %v639
    %688 = vmatprep.subr.mxu0 0.0
    %689 = vmatpush1.msra.mxu0 %v638
    %690 = vmatprep.subr.mxu0 0.0
    %691 = vmatpush1.msra.mxu0 %v637
    %692 = vmatprep.subr.mxu0 0.0
    %693 = vmatpush2.msra.mxu0 0.0
    %694 = vmatprep.subr.mxu0 0.0
    %695 = vmatpush2.msra.mxu0 0.0
    %696 = vmatprep.subr.mxu0 0.0
    %697 = vmatpush2.msra.mxu0 0.0
    %698 = vmatprep.subr.mxu0 0.0
    %699 = vmatpush2.msra.mxu0 0.0
    %700 = vmatprep.subr.mxu0 0.0
    %701 = vmatpush2.msra.mxu0 0.0
    %702 = vmatprep.subr.mxu0 0.0
    %703 = vmatpush2.msra.mxu0 0.0
    %704 = vmatprep.subr.mxu0 0.0
    %705 = vmatpush2.msra.mxu0 0.0
    %706 = vmatprep.subr.mxu0 0.0
    %707 = vmatpush2.msra.mxu0 0.0
    %708 = vmatprep.subr.mxu0 0.0
    %709 = vmatpush2.msra.mxu0 0.0
    %710 = vmatprep.subr.mxu0 0.0
    %711 = vmatpush2.msra.mxu0 0.0
    %712 = vmatprep.subr.mxu0 0.0
    %713 = vmatpush2.msra.mxu0 0.0
    %714 = vmatprep.subr.mxu0 0.0
    %715 = vmatpush2.msra.mxu0 0.0
    %716 = vmatprep.subr.mxu0 0.0
    %717 = vmatpush2.msra.mxu0 0.0
    %718 = vmatprep.subr.mxu0 0.0
    %719 = vmatpush2.msra.mxu0 0.0
    %720 = vmatprep.subr.mxu0 0.0
    %721 = vmatpush2.msra.mxu0 0.0
    %722 = vmatprep.subr.mxu0 0.0
    %723 = vmatpush2.msra.mxu0 0.0
    %724 = vmatprep.mubr.f32.mxu0 0.0
    %725 = vmatmul.mubr.f32.gmra.mxu0 %v629
    %v726 = vpop.f32.mrf.mxu0
    %v727 = vadd.f32 %v658, %v726
    %v728 = vpop.f32.mrf.mxu0
    %729 = vmatprep.mubr.f32.mxu0 0.0
    %730 = vmatmul.mubr.f32.gmra.mxu0 %v630
    %v731 = vpop.f32.mrf.mxu0
    %v732 = vadd.f32 %v658, %v731
    %v733 = vpop.f32.mrf.mxu0
    %734 = vmatprep.mubr.f32.mxu0 0.0
    %735 = vmatmul.mubr.f32.gmra.mxu0 %v631
    %v736 = vpop.f32.mrf.mxu0
    %v737 = vadd.f32 %v658, %v736
    %v738 = vpop.f32.mrf.mxu0
    %739 = vmatprep.mubr.f32.mxu0 0.0
    %740 = vmatmul.mubr.f32.gmra.mxu0 %v632
    %v741 = vpop.f32.mrf.mxu0
    %v742 = vadd.f32 %v658, %v741
    %v743 = vpop.f32.mrf.mxu0
    %744 = vmatprep.mubr.f32.mxu0 0.0
    %745 = vmatmul.mubr.f32.gmra.mxu0 %v633
    %v746 = vpop.f32.mrf.mxu0
    %v747 = vadd.f32 %v658, %v746
    %v748 = vpop.f32.mrf.mxu0
    %749 = vmatprep.mubr.f32.mxu0 0.0
    %750 = vmatmul.mubr.f32.gmra.mxu0 %v634
    %v751 = vpop.f32.mrf.mxu0
    %v752 = vadd.f32 %v658, %v751
    %v753 = vpop.f32.mrf.mxu0
    %754 = vmatprep.mubr.f32.mxu0 0.0
    %755 = vmatmul.mubr.f32.gmra.mxu0 %v635
    %v756 = vpop.f32.mrf.mxu0
    %v757 = vadd.f32 %v658, %v756
    %v758 = vpop.f32.mrf.mxu0
    %759 = vmatprep.mubr.f32.mxu0 0.0
    %760 = vmatmul.mubr.f32.gmra.mxu0 %v636
    %v761 = vpop.f32.mrf.mxu0
    %v762 = vadd.f32 %v658, %v761
    %v763 = vpop.f32.mrf.mxu0
    %764 = vdwg.mxu0
    %vm765 = vcmask 15360
    %766 = vst.msk [vmem:[%s10] sm:$0xff] %vm765, %v727
    %767 = vst.msk [vmem:[%s10 + $0x8] sm:$0xff] %vm765, %v732
    %768 = vst.msk [vmem:[%s10 + $0x10] sm:$0xff] %vm765, %v737
    %769 = vst.msk [vmem:[%s10 + $0x18] sm:$0xff] %vm765, %v742
    %770 = vst.msk [vmem:[%s10 + $0x20] sm:$0xff] %vm765, %v747
    %771 = vst.msk [vmem:[%s10 + $0x28] sm:$0xff] %vm765, %v752
    %772 = vst.msk [vmem:[%s10 + $0x30] sm:$0xff] %vm765, %v757
    %773 = vst.msk [vmem:[%s10 + $0x38] sm:$0xff] %vm765, %v762
    // Predicated region
    $region50: #{flow_forward.1} parent=1 // pred_check
      _
    $region51: #{flow_forward.1} parent=1 // pred_check_branch
      %775 = sbr.rel (0) target = $region53
    $region52: #{flow_forward.1} parent=1 // pred_region
      _
    $region53: #{flow_forward.1} parent=1 // pred_fallthru
      _
    // Predicated region
    $region54: #{flow_forward.1} parent=1 // pred_check
      _
    $region55: #{flow_forward.1} parent=1 // pred_check_branch
      %777 = sbr.rel (0) target = $region57
    $region56: #{flow_forward.1} parent=1 // pred_region
      _
    $region57: #{flow_forward.1} parent=1 // pred_fallthru
      _
    %778 = vsyncpa [#allocation3], 1
    %779 = vsyncpa [#allocation5], 1

</llo_original>
